<compile_context>
chip_gen: v7x
topology: tpu7x:2x2x1
jax: 0.10.0
libtpu: 0.0.40
codegen_flags: <defaults>
</compile_context>

<pallas_src>
import math
import jax
import jax.numpy as jnp
from jax.experimental import pallas as pl
from jax.experimental.pallas import tpu as pltpu

# ---------------------------------------------------------------------------
# Model dimensions (small, consistent with the module's forward)
# ---------------------------------------------------------------------------
B = 2        # batch
S = 8        # sequence length
H = 32       # hidden size ("bert_encoder.config.hidden_size")
F = 64       # FFN intermediate size
OUTPUTS = 3  # classifier outputs
VOCAB = 100
LANE = 128   # lane-dense padding width


def _layernorm(x, gamma, beta, eps=1e-12):
    # eps=1e-12 matches the standard BERT config.
    mean = jnp.mean(x, axis=-1, keepdims=True)
    var = jnp.mean(jnp.square(x - mean), axis=-1, keepdims=True)
    inv = jax.lax.rsqrt(var + eps)
    return (x - mean) * inv * gamma + beta


def _gelu(x):
    # tanh approximation (EUP-friendly).
    # TODO(synk): PyTorch nn.GELU default is the exact erf form; tanh approx
    # differs by <1e-3 relative and keeps the op on the EUP.
    c = math.sqrt(2.0 / math.pi)
    return 0.5 * x * (1.0 + jnp.tanh(c * (x + 0.044715 * x * x * x)))


def email_classifier_kernel(x_ref, mask_ref, wqkvo_ref, wffn_ref, whead_ref,
                            p_ref, out_ref):
    bt, seq, hid = x_ref.shape            # (batch_tile, S, H)
    fdim = wffn_ref.shape[1]              # FFN width

    x = x_ref[...]                        # (bt, S, H) f32
    mask = mask_ref[...]                  # (bt, S)    f32, 1.0 = valid token
    p = p_ref[...]                        # (8, 128)   f32 biases + LN params
    wqkvo = wqkvo_ref[...]                # (H, 4H)    bf16

    # ---- fused Q|K|V|(O) projection: one bf16 MXU pass, 128-lane output ----
    x2d = x.reshape(bt * seq, hid).astype(jnp.bfloat16)
    qkv = jnp.dot(x2d, wqkvo, preferred_element_type=jnp.float32) + p[0:1, :]
    qkv3 = qkv.reshape(bt, seq, 4 * hid)

    q_last = qkv3[:, seq - 1, 0:hid]      # (bt, H)   only last token's query matters
    k = qkv3[:, :, hid:2 * hid]           # (bt, S, H)
    v = qkv3[:, :, 2 * hid:3 * hid]       # (bt, S, H)

    # ---- single-head attention for the last query row (f32 softmax) -------
    scale = 1.0 / math.sqrt(hid)
    scores = jnp.sum(q_last[:, None, :] * k, axis=-1) * scale        # (bt, S)
    scores = scores + (1.0 - mask) * (-1e9)                          # key mask
    m = jnp.max(scores, axis=-1, keepdims=True)
    e = jnp.exp(scores - m)
    attn = e * pl.reciprocal(jnp.sum(e, axis=-1, keepdims=True), approx=True)
    ctx = jnp.sum(attn[:, :, None] * v, axis=1)                      # (bt, H)

    wo = wqkvo[:, 3 * hid:4 * hid]                                   # (H, H) bf16
    bo = p[0:1, 3 * hid:4 * hid]                                     # (1, H) f32
    attn_out = jnp.dot(ctx.astype(jnp.bfloat16), wo,
                       preferred_element_type=jnp.float32) + bo      # (bt, H)

    x_last = x[:, seq - 1, :]                                        # residual row
    h1 = _layernorm(x_last + attn_out, p[1:2, :hid], p[2:3, :hid])   # (bt, H)

    # ---- feed-forward (only on the last-token row) -------------------------
    wffn = wffn_ref[...]                                             # (H+F, F) bf16
    w1 = wffn[:hid, :]                                               # (H, F)
    w2p = wffn[hid:, :]                                              # (F, F), cols >= H are zero
    ff = _gelu(jnp.dot(h1.astype(jnp.bfloat16), w1,
                       preferred_element_type=jnp.float32) + p[3:4, :fdim])
    ffd = jnp.dot(ff.astype(jnp.bfloat16), w2p,
                  preferred_element_type=jnp.float32)[:, :hid] + p[4:5, :hid]

    h2 = _layernorm(h1 + ffd, p[5:6, :hid], p[6:7, :hid])   # last_hidden_state[:, -1, :]

    # ---- EmailClassifier head ----------------------------------------------
    # nn.Dropout(0.1) is eval-mode identity.
    # TODO(synk): training-mode dropout would use pltpu.prng_seed + prng_random_bits.
    logits = jnp.dot(h2.astype(jnp.bfloat16), whead_ref[...],
                     preferred_element_type=jnp.float32) + p[7:8, :]
    out_ref[...] = logits                 # (bt, 128) lane-dense; cols >= OUTPUTS are zero


def init_params(key):
    ks = jax.random.split(key, 10)

    def dense(k, shape, scale):
        return jax.random.normal(k, shape, jnp.float32) * scale

    s = 1.0 / math.sqrt(H)
    return {
        'emb':  dense(ks[0], (VOCAB, H), 0.02),
        'pos':  dense(ks[1], (S, H), 0.02),
        'wq':   dense(ks[2], (H, H), s),  'bq': jnp.zeros((H,), jnp.float32),
        'wk':   dense(ks[3], (H, H), s),  'bk': jnp.zeros((H,), jnp.float32),
        'wv':   dense(ks[4], (H, H), s),  'bv': jnp.zeros((H,), jnp.float32),
        'wo':   dense(ks[5], (H, H), s),  'bo': jnp.zeros((H,), jnp.float32),
        'ln1g': jnp.ones((H,), jnp.float32), 'ln1b': jnp.zeros((H,), jnp.float32),
        'w1':   dense(ks[6], (H, F), s),  'b1': jnp.zeros((F,), jnp.float32),
        'w2':   dense(ks[7], (F, H), 1.0 / math.sqrt(F)),
        'b2':   jnp.zeros((H,), jnp.float32),
        'ln2g': jnp.ones((H,), jnp.float32), 'ln2b': jnp.zeros((H,), jnp.float32),
        'wc':   dense(ks[8], (H, OUTPUTS), s),
        'bc':   jnp.zeros((OUTPUTS,), jnp.float32),
    }


def pack_params(p):
    """Pack all weights/biases into 4 DMA-friendly slabs (plus embeddings)."""
    w_qkvo = jnp.concatenate([p['wq'], p['wk'], p['wv'], p['wo']],
                             axis=1).astype(jnp.bfloat16)                 # (H, 4H) = (32, 128)
    w2_pad = jnp.pad(p['w2'], ((0, 0), (0, F - H)))                       # (F, F), zero-padded cols
    w_ffn = jnp.concatenate([p['w1'], w2_pad],
                            axis=0).astype(jnp.bfloat16)                  # (H+F, F) = (96, 64)
    w_head = jnp.pad(p['wc'],
                     ((0, 0), (0, LANE - OUTPUTS))).astype(jnp.bfloat16)  # (H, 128) lane-dense

    def row(v):
        v = v.reshape(-1)
        return jnp.pad(v, (0, LANE - v.shape[0]))

    pslab = jnp.stack([
        row(jnp.concatenate([p['bq'], p['bk'], p['bv'], p['bo']])),  # row 0: fused qkvo bias
        row(p['ln1g']), row(p['ln1b']),                              # rows 1-2
        row(p['b1']), row(p['b2']),                                  # rows 3-4
        row(p['ln2g']), row(p['ln2b']),                              # rows 5-6
        row(p['bc']),                                                # row 7 (lane-padded)
    ], axis=0).astype(jnp.float32)                                   # (8, 128): one f32 tile

    return {'emb': p['emb'], 'pos': p['pos'],
            'w_qkvo': w_qkvo, 'w_ffn': w_ffn, 'w_head': w_head, 'pslab': pslab}


@jax.jit
def email_classifier_forward(packed, src, mask):
    btot, seq = src.shape
    # Glue: embedding gather + position add (gather has no clean tile map).
    x_emb = packed['emb'][src] + packed['pos'][None, :, :]          # (B, S, H) f32
    mask_f = mask.astype(jnp.float32)                               # (B, S)

    # One batch tile per grid step. For large serving batches, set bt to a
    # multiple of 8 (< btot) so the parallel grid shards across TensorCores.
    bt = btot
    grid = (btot // bt,)

    logits_pad = pl.pallas_call(
        email_classifier_kernel,
        out_shape=jax.ShapeDtypeStruct((btot, LANE), jnp.float32),
        grid=grid,
        in_specs=[
            pl.BlockSpec((bt, seq, H), lambda i: (i, 0, 0)),        # activations
            pl.BlockSpec((bt, seq), lambda i: (i, 0)),              # attention mask
            pl.BlockSpec((H, 4 * H), lambda i: (0, 0)),             # Wq|Wk|Wv|Wo (bf16)
            pl.BlockSpec((H + F, F), lambda i: (0, 0)),             # W1 ; W2(padded) (bf16)
            pl.BlockSpec((H, LANE), lambda i: (0, 0)),              # Wc lane-padded (bf16)
            pl.BlockSpec((8, LANE), lambda i: (0, 0)),              # biases + LN params (f32)
        ],
        out_specs=pl.BlockSpec((bt, LANE), lambda i: (i, 0)),
        compiler_params=pltpu.CompilerParams(
            dimension_semantics=("parallel",)),
    )(x_emb, mask_f, packed['w_qkvo'], packed['w_ffn'],
      packed['w_head'], packed['pslab'])

    return logits_pad[:, :OUTPUTS]


if __name__ == "__main__":
    key = jax.random.PRNGKey(0)
    pkey, skey = jax.random.split(key)
    params = init_params(pkey)
    packed = pack_params(params)

    # src: token ids (B, S); mask: 1 for real tokens, 0 for padding.
    src = jax.random.randint(skey, (B, S), 0, VOCAB, dtype=jnp.int32)
    mask = jnp.concatenate(
        [jnp.ones((B, S - 2), jnp.int32), jnp.zeros((B, 2), jnp.int32)], axis=1)

    logits = email_classifier_forward(packed, src, mask)
    jax.block_until_ready(logits)
    assert logits.shape == (B, OUTPUTS)
    assert bool(jnp.all(jnp.isfinite(logits)))
    print("KERNEL_OK")
</pallas_src>

<mosaic_0001>
module attributes {stable_mosaic.version = 11 : i64} {
  func.func @email_classifier_kernel(%arg0: i32, %arg1: memref<2x8x32xf32, #tpu.memory_space<vmem>>, %arg2: memref<2x8xf32, #tpu.memory_space<vmem>>, %arg3: memref<32x128xbf16, #tpu.memory_space<vmem>>, %arg4: memref<96x64xbf16, #tpu.memory_space<vmem>>, %arg5: memref<32x128xbf16, #tpu.memory_space<vmem>>, %arg6: memref<8x128xf32, #tpu.memory_space<vmem>>, %arg7: memref<2x128xf32, #tpu.memory_space<vmem>>) attributes {dimension_semantics = [#tpu.dimension_semantics<parallel>], iteration_bounds = array<i64: 1>, scalar_prefetch = 0 : i64, scratch_operands = 0 : i64, tpu.core_type = #tpu.core_type<tc>, window_params = [{transform_indices = @transform_0, window_bounds = array<i64: 2, 8, 32>}, {transform_indices = @transform_1, window_bounds = array<i64: 2, 8>}, {pipeline_mode = #tpu.pipeline_mode<synchronous>, transform_indices = @transform_2, window_bounds = array<i64: 32, 128>}, {pipeline_mode = #tpu.pipeline_mode<synchronous>, transform_indices = @transform_3, window_bounds = array<i64: 96, 64>}, {pipeline_mode = #tpu.pipeline_mode<synchronous>, transform_indices = @transform_4, window_bounds = array<i64: 32, 128>}, {pipeline_mode = #tpu.pipeline_mode<synchronous>, transform_indices = @transform_5, window_bounds = array<i64: 8, 128>}, {transform_indices = @transform_6, window_bounds = array<i64: 2, 128>}]} {
    %c0 = arith.constant 0 : index
    %c0_0 = arith.constant 0 : index
    %c0_1 = arith.constant 0 : index
    %0 = vector.load %arg1[%c0, %c0_0, %c0_1] : memref<2x8x32xf32, #tpu.memory_space<vmem>>, vector<2x8x32xf32>
    %c0_2 = arith.constant 0 : index
    %c0_3 = arith.constant 0 : index
    %1 = vector.load %arg2[%c0_2, %c0_3] : memref<2x8xf32, #tpu.memory_space<vmem>>, vector<2x8xf32>
    %c0_4 = arith.constant 0 : index
    %c0_5 = arith.constant 0 : index
    %2 = vector.load %arg6[%c0_4, %c0_5] : memref<8x128xf32, #tpu.memory_space<vmem>>, vector<8x128xf32>
    %c0_6 = arith.constant 0 : index
    %c0_7 = arith.constant 0 : index
    %3 = vector.load %arg3[%c0_6, %c0_7] : memref<32x128xbf16, #tpu.memory_space<vmem>>, vector<32x128xbf16>
    %4 = vector.shape_cast %0 : vector<2x8x32xf32> to vector<16x32xf32>
    %5 = arith.truncf %4 : vector<16x32xf32> to vector<16x32xbf16>
    %cst = arith.constant dense<0.000000e+00> : vector<16x128xf32>
    %6 = tpu.matmul %5, %3, %cst {dimension_numbers = #tpu.dot_dimension_numbers<[1], [0], [0], [1], [0, 0, 1, 1], [], []>} : vector<16x32xbf16>, vector<32x128xbf16>, vector<16x128xf32> -> vector<16x128xf32>
    %7 = vector.extract_strided_slice %2 {offsets = [0, 0], sizes = [1, 128], strides = [1, 1]} : vector<8x128xf32> to vector<1x128xf32>
    %8 = vector.broadcast %7 : vector<1x128xf32> to vector<16x128xf32>
    %9 = arith.addf %6, %8 : vector<16x128xf32>
    %10 = vector.shape_cast %9 : vector<16x128xf32> to vector<2x8x128xf32>
    %11 = vector.extract_strided_slice %10 {offsets = [0, 7, 0], sizes = [2, 1, 32], strides = [1, 1, 1]} : vector<2x8x128xf32> to vector<2x1x32xf32>
    %12 = vector.shape_cast %11 : vector<2x1x32xf32> to vector<2x32xf32>
    %13 = vector.extract_strided_slice %10 {offsets = [0, 0, 32], sizes = [2, 8, 32], strides = [1, 1, 1]} : vector<2x8x128xf32> to vector<2x8x32xf32>
    %14 = vector.extract_strided_slice %10 {offsets = [0, 0, 64], sizes = [2, 8, 32], strides = [1, 1, 1]} : vector<2x8x128xf32> to vector<2x8x32xf32>
    %15 = vector.shape_cast %12 : vector<2x32xf32> to vector<2x1x32xf32>
    %16 = vector.broadcast %15 : vector<2x1x32xf32> to vector<2x8x32xf32>
    %17 = arith.mulf %16, %13 : vector<2x8x32xf32>
    %cst_8 = arith.constant dense<0.000000e+00> : vector<2x8xf32>
    %18 = vector.multi_reduction <add>, %17, %cst_8 [2] : vector<2x8x32xf32> to vector<2x8xf32>
    %cst_9 = arith.constant 0.176776692 : f32
    %19 = vector.broadcast %cst_9 : f32 to vector<2x8xf32>
    %20 = arith.mulf %18, %19 : vector<2x8xf32>
    %cst_10 = arith.constant 1.000000e+00 : f32
    %21 = vector.broadcast %cst_10 : f32 to vector<2x8xf32>
    %22 = arith.subf %21, %1 : vector<2x8xf32>
    %cst_11 = arith.constant -1.000000e+09 : f32
    %23 = vector.broadcast %cst_11 : f32 to vector<2x8xf32>
    %24 = arith.mulf %22, %23 : vector<2x8xf32>
    %25 = arith.addf %20, %24 : vector<2x8xf32>
    %cst_12 = arith.constant dense<0xFF800000> : vector<2xf32>
    %26 = vector.multi_reduction <maximumf>, %25, %cst_12 [1] : vector<2x8xf32> to vector<2xf32>
    %27 = vector.shape_cast %26 : vector<2xf32> to vector<2x1xf32>
    %28 = vector.broadcast %27 : vector<2x1xf32> to vector<2x8xf32>
    %29 = arith.subf %25, %28 : vector<2x8xf32>
    %30 = math.exp %29 : vector<2x8xf32>
    %cst_13 = arith.constant dense<0.000000e+00> : vector<2xf32>
    %31 = vector.multi_reduction <add>, %30, %cst_13 [1] : vector<2x8xf32> to vector<2xf32>
    %32 = vector.shape_cast %31 : vector<2xf32> to vector<2x1xf32>
    %33 = tpu.reciprocal %32 {approx = true} : vector<2x1xf32> -> vector<2x1xf32>
    %34 = vector.broadcast %33 : vector<2x1xf32> to vector<2x8xf32>
    %35 = arith.mulf %30, %34 : vector<2x8xf32>
    %36 = vector.shape_cast %35 : vector<2x8xf32> to vector<2x8x1xf32>
    %37 = vector.broadcast %36 : vector<2x8x1xf32> to vector<2x8x32xf32>
    %38 = arith.mulf %37, %14 : vector<2x8x32xf32>
    %cst_14 = arith.constant dense<0.000000e+00> : vector<2x32xf32>
    %39 = vector.multi_reduction <add>, %38, %cst_14 [1] : vector<2x8x32xf32> to vector<2x32xf32>
    %40 = vector.extract_strided_slice %3 {offsets = [0, 96], sizes = [32, 32], strides = [1, 1]} : vector<32x128xbf16> to vector<32x32xbf16>
    %41 = vector.extract_strided_slice %2 {offsets = [0, 96], sizes = [1, 32], strides = [1, 1]} : vector<8x128xf32> to vector<1x32xf32>
    %42 = arith.truncf %39 : vector<2x32xf32> to vector<2x32xbf16>
    %cst_15 = arith.constant dense<0.000000e+00> : vector<2x32xf32>
    %43 = tpu.matmul %42, %40, %cst_15 {dimension_numbers = #tpu.dot_dimension_numbers<[1], [0], [0], [1], [0, 0, 1, 1], [], []>} : vector<2x32xbf16>, vector<32x32xbf16>, vector<2x32xf32> -> vector<2x32xf32>
    %44 = vector.broadcast %41 : vector<1x32xf32> to vector<2x32xf32>
    %45 = arith.addf %43, %44 : vector<2x32xf32>
    %46 = vector.extract_strided_slice %0 {offsets = [0, 7, 0], sizes = [2, 1, 32], strides = [1, 1, 1]} : vector<2x8x32xf32> to vector<2x1x32xf32>
    %47 = vector.shape_cast %46 : vector<2x1x32xf32> to vector<2x32xf32>
    %48 = arith.addf %47, %45 : vector<2x32xf32>
    %49 = vector.extract_strided_slice %2 {offsets = [1, 0], sizes = [1, 32], strides = [1, 1]} : vector<8x128xf32> to vector<1x32xf32>
    %50 = vector.extract_strided_slice %2 {offsets = [2, 0], sizes = [1, 32], strides = [1, 1]} : vector<8x128xf32> to vector<1x32xf32>
    %cst_16 = arith.constant dense<0.000000e+00> : vector<2xf32>
    %51 = vector.multi_reduction <add>, %48, %cst_16 [1] : vector<2x32xf32> to vector<2xf32>
    %52 = vector.shape_cast %51 : vector<2xf32> to vector<2x1xf32>
    %cst_17 = arith.constant 3.200000e+01 : f32
    %53 = vector.broadcast %cst_17 : f32 to vector<2x1xf32>
    %54 = arith.divf %52, %53 : vector<2x1xf32>
    %55 = vector.broadcast %54 : vector<2x1xf32> to vector<2x32xf32>
    %56 = arith.subf %48, %55 : vector<2x32xf32>
    %57 = arith.mulf %56, %56 : vector<2x32xf32>
    %cst_18 = arith.constant dense<0.000000e+00> : vector<2xf32>
    %58 = vector.multi_reduction <add>, %57, %cst_18 [1] : vector<2x32xf32> to vector<2xf32>
    %59 = vector.shape_cast %58 : vector<2xf32> to vector<2x1xf32>
    %cst_19 = arith.constant 3.200000e+01 : f32
    %60 = vector.broadcast %cst_19 : f32 to vector<2x1xf32>
    %61 = arith.divf %59, %60 : vector<2x1xf32>
    %cst_20 = arith.constant 9.99999996E-13 : f32
    %62 = vector.broadcast %cst_20 : f32 to vector<2x1xf32>
    %63 = arith.addf %61, %62 : vector<2x1xf32>
    %64 = math.rsqrt %63 : vector<2x1xf32>
    %65 = vector.broadcast %54 : vector<2x1xf32> to vector<2x32xf32>
    %66 = arith.subf %48, %65 : vector<2x32xf32>
    %67 = vector.broadcast %64 : vector<2x1xf32> to vector<2x32xf32>
    %68 = arith.mulf %66, %67 : vector<2x32xf32>
    %69 = vector.broadcast %49 : vector<1x32xf32> to vector<2x32xf32>
    %70 = arith.mulf %68, %69 : vector<2x32xf32>
    %71 = vector.broadcast %50 : vector<1x32xf32> to vector<2x32xf32>
    %72 = arith.addf %70, %71 : vector<2x32xf32>
    %c0_21 = arith.constant 0 : index
    %c0_22 = arith.constant 0 : index
    %73 = vector.load %arg4[%c0_21, %c0_22] : memref<96x64xbf16, #tpu.memory_space<vmem>>, vector<96x64xbf16>
    %74 = vector.extract_strided_slice %73 {offsets = [0, 0], sizes = [32, 64], strides = [1, 1]} : vector<96x64xbf16> to vector<32x64xbf16>
    %75 = vector.extract_strided_slice %73 {offsets = [32, 0], sizes = [64, 64], strides = [1, 1]} : vector<96x64xbf16> to vector<64x64xbf16>
    %76 = arith.truncf %72 : vector<2x32xf32> to vector<2x32xbf16>
    %cst_23 = arith.constant dense<0.000000e+00> : vector<2x64xf32>
    %77 = tpu.matmul %76, %74, %cst_23 {dimension_numbers = #tpu.dot_dimension_numbers<[1], [0], [0], [1], [0, 0, 1, 1], [], []>} : vector<2x32xbf16>, vector<32x64xbf16>, vector<2x64xf32> -> vector<2x64xf32>
    %78 = vector.extract_strided_slice %2 {offsets = [3, 0], sizes = [1, 64], strides = [1, 1]} : vector<8x128xf32> to vector<1x64xf32>
    %79 = vector.broadcast %78 : vector<1x64xf32> to vector<2x64xf32>
    %80 = arith.addf %77, %79 : vector<2x64xf32>
    %cst_24 = arith.constant 5.000000e-01 : f32
    %81 = vector.broadcast %cst_24 : f32 to vector<2x64xf32>
    %82 = arith.mulf %81, %80 : vector<2x64xf32>
    %cst_25 = arith.constant 4.471500e-02 : f32
    %83 = vector.broadcast %cst_25 : f32 to vector<2x64xf32>
    %84 = arith.mulf %83, %80 : vector<2x64xf32>
    %85 = arith.mulf %84, %80 : vector<2x64xf32>
    %86 = arith.mulf %85, %80 : vector<2x64xf32>
    %87 = arith.addf %80, %86 : vector<2x64xf32>
    %cst_26 = arith.constant 0.797884583 : f32
    %88 = vector.broadcast %cst_26 : f32 to vector<2x64xf32>
    %89 = arith.mulf %88, %87 : vector<2x64xf32>
    %90 = math.tanh %89 : vector<2x64xf32>
    %cst_27 = arith.constant 1.000000e+00 : f32
    %91 = vector.broadcast %cst_27 : f32 to vector<2x64xf32>
    %92 = arith.addf %91, %90 : vector<2x64xf32>
    %93 = arith.mulf %82, %92 : vector<2x64xf32>
    %94 = arith.truncf %93 : vector<2x64xf32> to vector<2x64xbf16>
    %cst_28 = arith.constant dense<0.000000e+00> : vector<2x64xf32>
    %95 = tpu.matmul %94, %75, %cst_28 {dimension_numbers = #tpu.dot_dimension_numbers<[1], [0], [0], [1], [0, 0, 1, 1], [], []>} : vector<2x64xbf16>, vector<64x64xbf16>, vector<2x64xf32> -> vector<2x64xf32>
    %96 = vector.extract_strided_slice %95 {offsets = [0, 0], sizes = [2, 32], strides = [1, 1]} : vector<2x64xf32> to vector<2x32xf32>
    %97 = vector.extract_strided_slice %2 {offsets = [4, 0], sizes = [1, 32], strides = [1, 1]} : vector<8x128xf32> to vector<1x32xf32>
    %98 = vector.broadcast %97 : vector<1x32xf32> to vector<2x32xf32>
    %99 = arith.addf %96, %98 : vector<2x32xf32>
    %100 = arith.addf %72, %99 : vector<2x32xf32>
    %101 = vector.extract_strided_slice %2 {offsets = [5, 0], sizes = [1, 32], strides = [1, 1]} : vector<8x128xf32> to vector<1x32xf32>
    %102 = vector.extract_strided_slice %2 {offsets = [6, 0], sizes = [1, 32], strides = [1, 1]} : vector<8x128xf32> to vector<1x32xf32>
    %cst_29 = arith.constant dense<0.000000e+00> : vector<2xf32>
    %103 = vector.multi_reduction <add>, %100, %cst_29 [1] : vector<2x32xf32> to vector<2xf32>
    %104 = vector.shape_cast %103 : vector<2xf32> to vector<2x1xf32>
    %cst_30 = arith.constant 3.200000e+01 : f32
    %105 = vector.broadcast %cst_30 : f32 to vector<2x1xf32>
    %106 = arith.divf %104, %105 : vector<2x1xf32>
    %107 = vector.broadcast %106 : vector<2x1xf32> to vector<2x32xf32>
    %108 = arith.subf %100, %107 : vector<2x32xf32>
    %109 = arith.mulf %108, %108 : vector<2x32xf32>
    %cst_31 = arith.constant dense<0.000000e+00> : vector<2xf32>
    %110 = vector.multi_reduction <add>, %109, %cst_31 [1] : vector<2x32xf32> to vector<2xf32>
    %111 = vector.shape_cast %110 : vector<2xf32> to vector<2x1xf32>
    %cst_32 = arith.constant 3.200000e+01 : f32
    %112 = vector.broadcast %cst_32 : f32 to vector<2x1xf32>
    %113 = arith.divf %111, %112 : vector<2x1xf32>
    %cst_33 = arith.constant 9.99999996E-13 : f32
    %114 = vector.broadcast %cst_33 : f32 to vector<2x1xf32>
    %115 = arith.addf %113, %114 : vector<2x1xf32>
    %116 = math.rsqrt %115 : vector<2x1xf32>
    %117 = vector.broadcast %106 : vector<2x1xf32> to vector<2x32xf32>
    %118 = arith.subf %100, %117 : vector<2x32xf32>
    %119 = vector.broadcast %116 : vector<2x1xf32> to vector<2x32xf32>
    %120 = arith.mulf %118, %119 : vector<2x32xf32>
    %121 = vector.broadcast %101 : vector<1x32xf32> to vector<2x32xf32>
    %122 = arith.mulf %120, %121 : vector<2x32xf32>
    %123 = vector.broadcast %102 : vector<1x32xf32> to vector<2x32xf32>
    %124 = arith.addf %122, %123 : vector<2x32xf32>
    %125 = arith.truncf %124 : vector<2x32xf32> to vector<2x32xbf16>
    %c0_34 = arith.constant 0 : index
    %c0_35 = arith.constant 0 : index
    %126 = vector.load %arg5[%c0_34, %c0_35] : memref<32x128xbf16, #tpu.memory_space<vmem>>, vector<32x128xbf16>
    %cst_36 = arith.constant dense<0.000000e+00> : vector<2x128xf32>
    %127 = tpu.matmul %125, %126, %cst_36 {dimension_numbers = #tpu.dot_dimension_numbers<[1], [0], [0], [1], [0, 0, 1, 1], [], []>} : vector<2x32xbf16>, vector<32x128xbf16>, vector<2x128xf32> -> vector<2x128xf32>
    %128 = vector.extract_strided_slice %2 {offsets = [7, 0], sizes = [1, 128], strides = [1, 1]} : vector<8x128xf32> to vector<1x128xf32>
    %129 = vector.broadcast %128 : vector<1x128xf32> to vector<2x128xf32>
    %130 = arith.addf %127, %129 : vector<2x128xf32>
    %c0_37 = arith.constant 0 : index
    %c0_38 = arith.constant 0 : index
    %131 = vector.load %arg7[%c0_37, %c0_38] : memref<2x128xf32, #tpu.memory_space<vmem>>, vector<2x128xf32>
    tpu.vector_store %arg7[%c0_37, %c0_38], %130 {strides = array<i32>} : memref<2x128xf32, #tpu.memory_space<vmem>>, vector<2x128xf32>,
    return
  }
  func.func @transform_0(%arg0: i32) -> (i32, i32, i32) {
    %c0_i32 = arith.constant 0 : i32
    %c0_i32_0 = arith.constant 0 : i32
    %c0_i32_1 = arith.constant 0 : i32
    return %arg0, %c0_i32, %c0_i32_0 : i32, i32, i32
  }
  func.func @transform_1(%arg0: i32) -> (i32, i32) {
    %c0_i32 = arith.constant 0 : i32
    %c0_i32_0 = arith.constant 0 : i32
    return %arg0, %c0_i32 : i32, i32
  }
  func.func @transform_2(%arg0: i32) -> (i32, i32) {
    %c0_i32 = arith.constant 0 : i32
    %c0_i32_0 = arith.constant 0 : i32
    %c0_i32_1 = arith.constant 0 : i32
    return %c0_i32, %c0_i32_0 : i32, i32
  }
  func.func @transform_3(%arg0: i32) -> (i32, i32) {
    %c0_i32 = arith.constant 0 : i32
    %c0_i32_0 = arith.constant 0 : i32
    %c0_i32_1 = arith.constant 0 : i32
    return %c0_i32, %c0_i32_0 : i32, i32
  }
  func.func @transform_4(%arg0: i32) -> (i32, i32) {
    %c0_i32 = arith.constant 0 : i32
    %c0_i32_0 = arith.constant 0 : i32
    %c0_i32_1 = arith.constant 0 : i32
    return %c0_i32, %c0_i32_0 : i32, i32
  }
  func.func @transform_5(%arg0: i32) -> (i32, i32) {
    %c0_i32 = arith.constant 0 : i32
    %c0_i32_0 = arith.constant 0 : i32
    %c0_i32_1 = arith.constant 0 : i32
    return %c0_i32, %c0_i32_0 : i32, i32
  }
  func.func @transform_6(%arg0: i32) -> (i32, i32) {
    %c0_i32 = arith.constant 0 : i32
    %c0_i32_0 = arith.constant 0 : i32
    return %arg0, %c0_i32 : i32, i32
  }
}

</mosaic_0001>

<llo_original>
// kernel: email_classifier_forward.1
$region0: #{email_classifier_forward.1}
  #allocation0 [shape = 'u32[]', space=smem, size = 0x4, offset = 0x4, fixed_abs, tag = 'smem constant byte address 0x4 - core index']
  #allocation1 [shape = 'u32[144,128]{1,0:T(1,128)}', space=vmem, size = 0x12000, scoped, tag = 'internal scratch']
  %s0 = inlined_call_operand.vmem [shape: f32[2,8,32], index: 0, kind: input, shape index: {}]
  %s1 = inlined_call_operand.vmem [shape: f32[2,8], index: 1, kind: input, shape index: {}]
  %s2 = inlined_call_operand.vmem [shape: bf16[32,128], index: 2, kind: input, shape index: {}]
  %s3 = inlined_call_operand.vmem [shape: bf16[96,64], index: 3, kind: input, shape index: {}]
  %s4 = inlined_call_operand.vmem [shape: bf16[32,128], index: 4, kind: input, shape index: {}]
  %s5 = inlined_call_operand.vmem [shape: f32[8,128], index: 5, kind: input, shape index: {}]
  %s6 = inlined_call_operand.hbm [shape: f32[2,128], index: 6, kind: output, shape index: {}]
  %s7 = sld [smem:[#allocation0]]
  $region34: #{email_classifier_forward.1} parent=0
    _
  %s9 = ssub.s32 1, %s7
  %s10 = scalar_select 0, %s9, %s7
  $region1: #{email_classifier_forward.1} parent=0
    #allocation2 [shape = 'u8[1024]{0}', space=vmem, size = 0x400, scoped, tag = 'output window, operand 0, single buffered']
    #allocation3 [shape = 's32[1]{0}', space=sflag, size = 0x4, scoped, tag = 'scoped memory for email_classifier_forward.1']
    %11 = vsyncpa [#allocation3], 0
    // Predicated region
    $region2: #{email_classifier_forward.1} parent=1 // pred_check
      _
    $region3: #{email_classifier_forward.1} parent=1 // pred_check_branch
      %13 = sbr.rel (0) target = $region5
    $region4: #{email_classifier_forward.1} parent=1 // pred_region
      _
    $region5: #{email_classifier_forward.1} parent=1 // pred_fallthru
      _
    // Predicated region
    $region6: #{email_classifier_forward.1} parent=1 // pred_check
      _
    $region7: #{email_classifier_forward.1} parent=1 // pred_check_branch
      %15 = sbr.rel (0) target = $region9
    $region8: #{email_classifier_forward.1} parent=1 // pred_region
      _
    $region9: #{email_classifier_forward.1} parent=1 // pred_fallthru
      _
    // Predicated region
    $region10: #{email_classifier_forward.1} parent=1 // pred_check
      _
    $region11: #{email_classifier_forward.1} parent=1 // pred_check_branch
      %17 = sbr.rel (0) target = $region13
    $region12: #{email_classifier_forward.1} parent=1 // pred_region
      _
    $region13: #{email_classifier_forward.1} parent=1 // pred_fallthru
      _
    // Predicated region
    $region14: #{email_classifier_forward.1} parent=1 // pred_check
      _
    $region15: #{email_classifier_forward.1} parent=1 // pred_check_branch
      %19 = sbr.rel (0) target = $region17
    $region16: #{email_classifier_forward.1} parent=1 // pred_region
      _
    $region17: #{email_classifier_forward.1} parent=1 // pred_fallthru
      _
    // Predicated region
    $region18: #{email_classifier_forward.1} parent=1 // pred_check
      _
    $region19: #{email_classifier_forward.1} parent=1 // pred_check_branch
      %21 = sbr.rel (0) target = $region21
    $region20: #{email_classifier_forward.1} parent=1 // pred_region
      _
    $region21: #{email_classifier_forward.1} parent=1 // pred_fallthru
      _
    // Predicated region
    $region22: #{email_classifier_forward.1} parent=1 // pred_check
      _
    $region23: #{email_classifier_forward.1} parent=1 // pred_check_branch
      %23 = sbr.rel (0) target = $region25
    $region24: #{email_classifier_forward.1} parent=1 // pred_region
      _
    $region25: #{email_classifier_forward.1} parent=1 // pred_fallthru
      _
    %v25 = vld [vmem:[%s0] sm:$0xff]
    %v26 = vld [vmem:[%s0 + $0x8] sm:$0xff]
    %v27 = vld [vmem:[%s1] sm:$0x3]
    %v28 = vld [vmem:[%s5] sm:$0xff]
    %v29 = vld [vmem:[%s2] sm:$0xf]
    %v30 = vld [vmem:[%s2 + $0x4] sm:$0xf]
    %v31 = vld [vmem:[%s2 + $0x8] sm:$0xf]
    %v32 = vld [vmem:[%s2 + $0xc] sm:$0xf]
    %v33 = vpack.c.bf16 %v26, %v25
    %v34 = vlaneseq
    %v35 = vshrl.u32 %v34, 7
    %v36 = vsub.s32 0, %v35
    %v37 = vrot.slane %v28, %v36
    %v42 = vunpack.c.l.b16 %v29
    %v43 = vunpack.c.l.b16 %v30
    %v44 = vunpack.c.l.b16 %v31
    %v45 = vunpack.c.l.b16 %v32
    %v46 = vpack.c.b16 %v43, %v42
    %v47 = vpack.c.b16 %v45, %v44
    %vm50 = vcmask 261120
    %v52 = vsel %vm50, %v33, 0
    %54 = vmatprep.subr.bf16.mxu0 0
    %55 = vmatpush1.bf16.msra.mxu0 %v46
    %56 = vmatprep.subr.bf16.mxu0 0
    %57 = vmatpush1.bf16.msra.mxu0 %v47
    %58 = vmatprep.subr.bf16.mxu0 0
    %59 = vmatpush1.bf16.msra.mxu0 0
    %60 = vmatprep.subr.bf16.mxu0 0
    %61 = vmatpush1.bf16.msra.mxu0 0
    %62 = vmatprep.subr.bf16.mxu0 0
    %63 = vmatpush1.bf16.msra.mxu0 0
    %64 = vmatprep.subr.bf16.mxu0 0
    %65 = vmatpush1.bf16.msra.mxu0 0
    %66 = vmatprep.subr.bf16.mxu0 0
    %67 = vmatpush1.bf16.msra.mxu0 0
    %68 = vmatprep.subr.bf16.mxu0 0
    %69 = vmatpush1.bf16.msra.mxu0 0
    %70 = vmatprep.subr.bf16.mxu0 0
    %71 = vmatpush1.bf16.msra.mxu0 0
    %72 = vmatprep.subr.bf16.mxu0 0
    %73 = vmatpush1.bf16.msra.mxu0 0
    %74 = vmatprep.subr.bf16.mxu0 0
    %75 = vmatpush1.bf16.msra.mxu0 0
    %76 = vmatprep.subr.bf16.mxu0 0
    %77 = vmatpush1.bf16.msra.mxu0 0
    %78 = vmatprep.subr.bf16.mxu0 0
    %79 = vmatpush1.bf16.msra.mxu0 0
    %80 = vmatprep.subr.bf16.mxu0 0
    %81 = vmatpush1.bf16.msra.mxu0 0
    %82 = vmatprep.subr.bf16.mxu0 0
    %83 = vmatpush1.bf16.msra.mxu0 0
    %84 = vmatprep.subr.bf16.mxu0 0
    %85 = vmatpush1.bf16.msra.mxu0 0
    %86 = vmatprep.mubr.bf16.mxu0 0
    %87 = vmatmul.mubr.bf16.gmra.mrb[0].mxu0 %v52
    %v88 = vpop.f32.mrb[0].mxu0
    %v89 = vadd.f32 %v37, %v88
    %v90 = vpop.f32.mrb[0].mxu0
    %v91 = vpop.f32.mrb[0].mxu0
    %v92 = vadd.f32 %v37, %v91
    %v93 = vpop.f32.mrb[0].mxu0
    %94 = vdwg.mxu0
    %v95 = vlaneseq
    %v96 = vshrl.u32 %v95, 7
    %v97 = vsub.s32 7, %v96
    %v98 = vrot.slane %v89, %v97
    %v99 = vlaneseq
    %v100 = vshrl.u32 %v99, 7
    %v101 = vsub.s32 7, %v100
    %v102 = vrot.slane %v92, %v101
    %105 = vrot.lane.b32.xlu0 %v89, 96
    %v106 = vpop.permute.xlu0 %105
    %107 = vrot.lane.b32.xlu0 %v92, 96
    %v108 = vpop.permute.xlu0 %107
    %v111 = vmul.f32 %v98, %v106
    %v112 = vmul.f32 %v102, %v108
    %v113 = vsel %vm50, %v111, 0.0
    %114 = vadd.xlane.f32.xlu0 %v113
    %v115 = vpop.xlane.xlu0 %114
    %v116 = vsel %vm50, %v112, 0.0
    %117 = vadd.xlane.f32.xlu0 %v116
    %v118 = vpop.xlane.xlu0 %117
    %v119 = vmul.f32 %v115, 0.17677669
    %v120 = vmul.f32 %v118, 0.17677669
    %v121 = vsub.f32 1.0, %v27
    %v122 = vmul.f32 %v121, -1e+09
    %v124 = vlaneseq
    %v125 = vshrl.u32 %v124, 7
    %v126 = vsub.s32 0, %v125
    %v127 = vrot.slane %v122, %v126
    %129 = vbcast.lane.b32.xlu0 %v127, 256
    %v130 = vpop.permute.xlu0 %129
    %v131 = vlaneseq
    %v132 = vshrl.u32 %v131, 7
    %v133 = vsub.s32 1, %v132
    %v134 = vrot.slane %v122, %v133
    %136 = vbcast.lane.b32.xlu0 %v134, 256
    %v137 = vpop.permute.xlu0 %136
    %v140 = vadd.f32 %v119, %v130
    %v141 = vadd.f32 %v120, %v137
    %144 = vset.pattern.permute.xlu0 0
    %145 = vperm.xlu0 %144, %v140
    %v146 = vpop.permute.xlu0 %145
    %147 = vset.pattern.permute.xlu0 0
    %148 = vperm.xlu0 %147, %v141
    %v149 = vpop.permute.xlu0 %148
    %v150 = vlaneseq
    %v151 = vand.u32 %v150, 127
    %v152 = vlaneseq
    %v153 = vshrl.u32 %v152, 7
    %v154 = vsub.s32 %v151, %v153
    %v155 = vrot.slane %v146, %v154
    %v156 = vlaneseq
    %v157 = vshrl.u32 %v156, 7
    %v158 = vsub.s32 %v151, %v157
    %v159 = vrot.slane %v149, %v158
    %vm160 = vcmask 1041409
    %v161 = vsel %vm160, %v159, %v155
    %vm163 = vcmask 58368
    %v164 = vsel %vm163, %v161, -inf
    %165 = vmax.xlane.f32.xlu0 %v164
    %v166 = vpop.xlane.xlu0 %165
    %v168 = vlaneseq
    %v169 = vshrl.u32 %v168, 7
    %v170 = vsub.s32 0, %v169
    %v171 = vrot.slane %v166, %v170
    %v172 = vlaneseq
    %v173 = vshrl.u32 %v172, 7
    %v174 = vsub.s32 1, %v173
    %v175 = vrot.slane %v166, %v174
    %v178 = vsub.f32 %v140, %v171
    %v179 = vsub.f32 %v141, %v175
    %v180 = vmul.f32 %v178, 1.442695
    %v181 = vpow.pop %v180
    %v182 = vmul.f32 %v179, 1.442695
    %v183 = vpow.pop %v182
    %186 = vset.pattern.permute.xlu0 0
    %187 = vperm.xlu0 %186, %v181
    %v188 = vpop.permute.xlu0 %187
    %189 = vset.pattern.permute.xlu0 0
    %190 = vperm.xlu0 %189, %v183
    %v191 = vpop.permute.xlu0 %190
    %v192 = vlaneseq
    %v193 = vshrl.u32 %v192, 7
    %v194 = vsub.s32 %v151, %v193
    %v195 = vrot.slane %v188, %v194
    %v196 = vlaneseq
    %v197 = vshrl.u32 %v196, 7
    %v198 = vsub.s32 %v151, %v197
    %v199 = vrot.slane %v191, %v198
    %v200 = vsel %vm160, %v199, %v195
    %v202 = vsel %vm163, %v200, 0.0
    %203 = vadd.xlane.f32.xlu0 %v202
    %v204 = vpop.xlane.xlu0 %203
    %v205 = vrcp.pop %v204
    %v207 = vlaneseq
    %v208 = vshrl.u32 %v207, 7
    %v209 = vsub.s32 0, %v208
    %v210 = vrot.slane %v205, %v209
    %v211 = vlaneseq
    %v212 = vshrl.u32 %v211, 7
    %v213 = vsub.s32 1, %v212
    %v214 = vrot.slane %v205, %v213
    %v217 = vmul.f32 %v181, %v210
    %v218 = vmul.f32 %v183, %v214
    %220 = vset.pattern.permute.xlu0 0
    %221 = vperm.xlu0 %220, %v217
    %v222 = vpop.permute.xlu0 %221
    %225 = vset.pattern.permute.xlu0 0
    %226 = vperm.xlu0 %225, %v218
    %v227 = vpop.permute.xlu0 %226
    %v229 = vmul.f32 %v222, %v89
    %v230 = vmul.f32 %v227, %v92
    %vm231 = vcmask 785920
    %v232 = vsel %vm231, %v229, 0.0
    %v233 = vrot.slane %v232, 4
    %v234 = vadd.f32 %v232, %v233
    %v235 = vrot.slane %v234, 2
    %v236 = vadd.f32 %v234, %v235
    %v237 = vrot.slane %v236, 1
    %v238 = vadd.f32 %v236, %v237
    %v239 = vsel %vm231, %v230, 0.0
    %v240 = vrot.slane %v239, 4
    %v241 = vadd.f32 %v239, %v240
    %v242 = vrot.slane %v241, 2
    %v243 = vadd.f32 %v241, %v242
    %v244 = vrot.slane %v243, 1
    %v245 = vadd.f32 %v243, %v244
    %v246 = vpack.c.bf16 %v238, %v238
    %v247 = vpack.c.bf16 %v245, %v245
    %v250 = vunpack.c.l.b16 %v246
    %v251 = vunpack.c.l.b16 %v247
    %v252 = vsel %vm160, %v251, %v250
    %v253 = vpack.c.b16 %v252, %v252
    %254 = vrot.lane.b32.xlu0 %v253, 64
    %v255 = vpop.permute.xlu0 %254
    %256 = vrot.lane.b32.xlu0 %v46, 32
    %v257 = vpop.permute.xlu0 %256
    %258 = vrot.lane.b32.xlu0 %v47, 32
    %v259 = vpop.permute.xlu0 %258
    %263 = vrot.lane.b32.xlu0 %v37, 32
    %v264 = vpop.permute.xlu0 %263
    %v267 = vsel %vm50, %v255, 0
    %269 = vmatprep.subr.bf16.mxu0 0
    %270 = vmatpush1.bf16.msra.mxu0 %v257
    %271 = vmatprep.subr.bf16.mxu0 0
    %272 = vmatpush1.bf16.msra.mxu0 %v259
    %273 = vmatprep.subr.bf16.mxu0 0
    %274 = vmatpush1.bf16.msra.mxu0 0
    %275 = vmatprep.subr.bf16.mxu0 0
    %276 = vmatpush1.bf16.msra.mxu0 0
    %277 = vmatprep.subr.bf16.mxu0 0
    %278 = vmatpush1.bf16.msra.mxu0 0
    %279 = vmatprep.subr.bf16.mxu0 0
    %280 = vmatpush1.bf16.msra.mxu0 0
    %281 = vmatprep.subr.bf16.mxu0 0
    %282 = vmatpush1.bf16.msra.mxu0 0
    %283 = vmatprep.subr.bf16.mxu0 0
    %284 = vmatpush1.bf16.msra.mxu0 0
    %285 = vmatprep.subr.bf16.mxu0 0
    %286 = vmatpush1.bf16.msra.mxu0 0
    %287 = vmatprep.subr.bf16.mxu0 0
    %288 = vmatpush1.bf16.msra.mxu0 0
    %289 = vmatprep.subr.bf16.mxu0 0
    %290 = vmatpush1.bf16.msra.mxu0 0
    %291 = vmatprep.subr.bf16.mxu0 0
    %292 = vmatpush1.bf16.msra.mxu0 0
    %293 = vmatprep.subr.bf16.mxu0 0
    %294 = vmatpush1.bf16.msra.mxu0 0
    %295 = vmatprep.subr.bf16.mxu0 0
    %296 = vmatpush1.bf16.msra.mxu0 0
    %297 = vmatprep.subr.bf16.mxu0 0
    %298 = vmatpush1.bf16.msra.mxu0 0
    %299 = vmatprep.subr.bf16.mxu0 0
    %300 = vmatpush1.bf16.msra.mxu0 0
    %301 = vmatprep.mubr.bf16.mxu0 0
    %302 = vmatmul.mubr.bf16.gmra.mrb[0].mxu0 %v267
    %v303 = vpop.f32.mrb[0].mxu0
    %v304 = vadd.f32 %v264, %v303
    %v305 = vpop.f32.mrb[0].mxu0
    %v306 = vpop.f32.mrb[0].mxu0
    %v307 = vpop.f32.mrb[0].mxu0
    %308 = vdwg.mxu0
    %v310 = vrot.slane %v304, 1
    %v311 = vrot.slane %v304, 2
    %v314 = vadd.f32 %v25, %v310
    %v315 = vadd.f32 %v26, %v311
    %v318 = vrot.slane %v315, 7
    %vm321 = vcmask 261127
    %v322 = vsel %vm321, %v314, 0.0
    %323 = vadd.xlane.f32.xlu0 %v322
    %v324 = vpop.xlane.xlu0 %323
    %vm325 = vcmask 253952
    %v326 = vsel %vm325, %v318, 0.0
    %327 = vadd.xlane.f32.xlu0 %v326
    %v328 = vpop.xlane.xlu0 %327
    %v329 = vrcp.pop 32.0
    %v330 = vmul.f32 %v324, %v329
    %v331 = vmul.f32 %v328, %v329
    %v334 = vrot.slane %v331, 1
    %v337 = vsub.f32 %v314, %v330
    %v338 = vsub.f32 %v315, %v334
    %v339 = vmul.f32 %v337, %v337
    %v340 = vmul.f32 %v338, %v338
    %v343 = vrot.slane %v340, 7
    %v346 = vsel %vm321, %v339, 0.0
    %347 = vadd.xlane.f32.xlu0 %v346
    %v348 = vpop.xlane.xlu0 %347
    %v349 = vsel %vm325, %v343, 0.0
    %350 = vadd.xlane.f32.xlu0 %v349
    %v351 = vpop.xlane.xlu0 %350
    %v352 = vmul.f32 %v348, %v329
    %v353 = vmul.f32 %v351, %v329
    %v354 = vadd.f32 %v352, 1e-12
    %v355 = vadd.f32 %v353, 1e-12
    %v356 = vrsqrt.pop %v354
    %v357 = vrsqrt.pop %v355
    %v360 = vrot.slane %v357, 1
    %v363 = vmul.f32 %v337, %v356
    %v364 = vmul.f32 %v338, %v360
    %v365 = vlaneseq
    %v366 = vshrl.u32 %v365, 7
    %v367 = vsub.s32 1, %v366
    %v368 = vrot.slane %v28, %v367
    %v369 = vmul.f32 %v363, %v368
    %v370 = vmul.f32 %v364, %v368
    %v371 = vlaneseq
    %v372 = vshrl.u32 %v371, 7
    %v373 = vsub.s32 2, %v372
    %v374 = vrot.slane %v28, %v373
    %v375 = vadd.f32 %v369, %v374
    %v376 = vadd.f32 %v370, %v374
    %v377 = vld [vmem:[%s3] sm:$0xf]
    %v378 = vld [vmem:[%s3 + $0x4] sm:$0xf]
    %v379 = vld [vmem:[%s3 + $0x8] sm:$0xf]
    %v380 = vld [vmem:[%s3 + $0xc] sm:$0xf]
    %v381 = vld [vmem:[%s3 + $0x10] sm:$0xf]
    %v382 = vld [vmem:[%s3 + $0x14] sm:$0xf]
    %v383 = vld [vmem:[%s3 + $0x18] sm:$0xf]
    %v384 = vld [vmem:[%s3 + $0x1c] sm:$0xf]
    %v385 = vld [vmem:[%s3 + $0x20] sm:$0xf]
    %v386 = vld [vmem:[%s3 + $0x24] sm:$0xf]
    %v387 = vld [vmem:[%s3 + $0x28] sm:$0xf]
    %v388 = vld [vmem:[%s3 + $0x2c] sm:$0xf]
    %v389 = vpack.c.bf16 %v375, %v375
    %v390 = vpack.c.bf16 %v376, %v376
    %v391 = vlaneseq
    %v392 = vshrl.u32 %v391, 7
    %v393 = vsub.s32 3, %v392
    %v394 = vrot.slane %v28, %v393
    %v397 = vunpack.c.l.b16 %v389
    %v398 = vunpack.c.l.b16 %v390
    %v399 = vrot.slane %v397, 7
    %v400 = vrot.slane %v398, 6
    %v401 = vsel %vm160, %v400, %v399
    %v402 = vpack.c.b16 %v401, %v401
    %v407 = vunpack.c.l.b16 %v377
    %v408 = vunpack.c.l.b16 %v378
    %v409 = vunpack.c.l.b16 %v379
    %v410 = vunpack.c.l.b16 %v380
    %v411 = vpack.c.b16 %v408, %v407
    %v412 = vpack.c.b16 %v410, %v409
    %v416 = vsel %vm50, %v402, 0
    %418 = vmatprep.subr.bf16.mxu0 0
    %419 = vmatpush1.bf16.msra.mxu0 %v411
    %420 = vmatprep.subr.bf16.mxu0 0
    %421 = vmatpush1.bf16.msra.mxu0 %v412
    %422 = vmatprep.subr.bf16.mxu0 0
    %423 = vmatpush1.bf16.msra.mxu0 0
    %424 = vmatprep.subr.bf16.mxu0 0
    %425 = vmatpush1.bf16.msra.mxu0 0
    %426 = vmatprep.subr.bf16.mxu0 0
    %427 = vmatpush1.bf16.msra.mxu0 0
    %428 = vmatprep.subr.bf16.mxu0 0
    %429 = vmatpush1.bf16.msra.mxu0 0
    %430 = vmatprep.subr.bf16.mxu0 0
    %431 = vmatpush1.bf16.msra.mxu0 0
    %432 = vmatprep.subr.bf16.mxu0 0
    %433 = vmatpush1.bf16.msra.mxu0 0
    %434 = vmatprep.subr.bf16.mxu0 0
    %435 = vmatpush1.bf16.msra.mxu0 0
    %436 = vmatprep.subr.bf16.mxu0 0
    %437 = vmatpush1.bf16.msra.mxu0 0
    %438 = vmatprep.subr.bf16.mxu0 0
    %439 = vmatpush1.bf16.msra.mxu0 0
    %440 = vmatprep.subr.bf16.mxu0 0
    %441 = vmatpush1.bf16.msra.mxu0 0
    %442 = vmatprep.subr.bf16.mxu0 0
    %443 = vmatpush1.bf16.msra.mxu0 0
    %444 = vmatprep.subr.bf16.mxu0 0
    %445 = vmatpush1.bf16.msra.mxu0 0
    %446 = vmatprep.subr.bf16.mxu0 0
    %447 = vmatpush1.bf16.msra.mxu0 0
    %448 = vmatprep.subr.bf16.mxu0 0
    %449 = vmatpush1.bf16.msra.mxu0 0
    %450 = vmatprep.mubr.bf16.mxu0 0
    %451 = vmatmul.mubr.bf16.gmra.mrb[0].mxu0 %v416
    %v452 = vpop.f32.mrb[0].mxu0
    %v453 = vadd.f32 %v394, %v452
    %v454 = vpop.f32.mrb[0].mxu0
    %v455 = vpop.f32.mrb[0].mxu0
    %v456 = vpop.f32.mrb[0].mxu0
    %457 = vdwg.mxu0
    %v458 = vmul.f32 %v453, 0.5
    %v459 = vmul.f32 %v453, 0.044715
    %v460 = vmul.f32 %v459, %v453
    %v461 = vmul.f32 %v460, %v453
    %v462 = vadd.f32 %v453, %v461
    %v463 = vmul.f32 %v462, 0.7978846
    %v464 = vtanh.pop %v463
    %v465 = vadd.f32 %v464, 1.0
    %v466 = vmul.f32 %v458, %v465
    %v467 = vpack.c.bf16 %v466, %v466
    %v476 = vunpack.c.l.b16 %v381
    %v477 = vunpack.c.l.b16 %v382
    %v478 = vunpack.c.l.b16 %v383
    %v479 = vunpack.c.l.b16 %v384
    %v480 = vunpack.c.l.b16 %v385
    %v481 = vunpack.c.l.b16 %v386
    %v482 = vunpack.c.l.b16 %v387
    %v483 = vunpack.c.l.b16 %v388
    %v484 = vpack.c.b16 %v477, %v476
    %v485 = vpack.c.b16 %v479, %v478
    %v486 = vpack.c.b16 %v481, %v480
    %v487 = vpack.c.b16 %v483, %v482
    %vm492 = vcmask 523264
    %v494 = vsel %vm492, %v467, 0
    %496 = vmatprep.subr.bf16.mxu0 0
    %497 = vmatpush1.bf16.msra.mxu0 %v484
    %498 = vmatprep.subr.bf16.mxu0 0
    %499 = vmatpush1.bf16.msra.mxu0 %v485
    %500 = vmatprep.subr.bf16.mxu0 0
    %501 = vmatpush1.bf16.msra.mxu0 %v486
    %502 = vmatprep.subr.bf16.mxu0 0
    %503 = vmatpush1.bf16.msra.mxu0 %v487
    %504 = vmatprep.subr.bf16.mxu0 0
    %505 = vmatpush1.bf16.msra.mxu0 0
    %506 = vmatprep.subr.bf16.mxu0 0
    %507 = vmatpush1.bf16.msra.mxu0 0
    %508 = vmatprep.subr.bf16.mxu0 0
    %509 = vmatpush1.bf16.msra.mxu0 0
    %510 = vmatprep.subr.bf16.mxu0 0
    %511 = vmatpush1.bf16.msra.mxu0 0
    %512 = vmatprep.subr.bf16.mxu0 0
    %513 = vmatpush1.bf16.msra.mxu0 0
    %514 = vmatprep.subr.bf16.mxu0 0
    %515 = vmatpush1.bf16.msra.mxu0 0
    %516 = vmatprep.subr.bf16.mxu0 0
    %517 = vmatpush1.bf16.msra.mxu0 0
    %518 = vmatprep.subr.bf16.mxu0 0
    %519 = vmatpush1.bf16.msra.mxu0 0
    %520 = vmatprep.subr.bf16.mxu0 0
    %521 = vmatpush1.bf16.msra.mxu0 0
    %522 = vmatprep.subr.bf16.mxu0 0
    %523 = vmatpush1.bf16.msra.mxu0 0
    %524 = vmatprep.subr.bf16.mxu0 0
    %525 = vmatpush1.bf16.msra.mxu0 0
    %526 = vmatprep.subr.bf16.mxu0 0
    %527 = vmatpush1.bf16.msra.mxu0 0
    %528 = vmatprep.mubr.bf16.mxu0 0
    %529 = vmatmul.mubr.bf16.gmra.mrb[0].mxu0 %v494
    %v530 = vpop.f32.mrb[0].mxu0
    %v531 = vadd.f32 0.0, %v530
    %v532 = vpop.f32.mrb[0].mxu0
    %v533 = vpop.f32.mrb[0].mxu0
    %v534 = vpop.f32.mrb[0].mxu0
    %535 = vdwg.mxu0
    %v536 = vlaneseq
    %v537 = vshrl.u32 %v536, 7
    %v538 = vsub.s32 4, %v537
    %v539 = vrot.slane %v28, %v538
    %v540 = vadd.f32 %v531, %v539
    %v542 = vrot.slane %v540, 1
    %v543 = vrot.slane %v540, 2
    %v546 = vadd.f32 %v375, %v542
    %v547 = vadd.f32 %v376, %v543
    %v550 = vrot.slane %v547, 7
    %v553 = vsel %vm321, %v546, 0.0
    %554 = vadd.xlane.f32.xlu0 %v553
    %v555 = vpop.xlane.xlu0 %554
    %v556 = vsel %vm325, %v550, 0.0
    %557 = vadd.xlane.f32.xlu0 %v556
    %v558 = vpop.xlane.xlu0 %557
    %v559 = vmul.f32 %v555, %v329
    %v560 = vmul.f32 %v558, %v329
    %v563 = vrot.slane %v560, 1
    %v566 = vsub.f32 %v546, %v559
    %v567 = vsub.f32 %v547, %v563
    %v568 = vmul.f32 %v566, %v566
    %v569 = vmul.f32 %v567, %v567
    %v572 = vrot.slane %v569, 7
    %v575 = vsel %vm321, %v568, 0.0
    %576 = vadd.xlane.f32.xlu0 %v575
    %v577 = vpop.xlane.xlu0 %576
    %v578 = vsel %vm325, %v572, 0.0
    %579 = vadd.xlane.f32.xlu0 %v578
    %v580 = vpop.xlane.xlu0 %579
    %v581 = vmul.f32 %v577, %v329
    %v582 = vmul.f32 %v580, %v329
    %v583 = vadd.f32 %v581, 1e-12
    %v584 = vadd.f32 %v582, 1e-12
    %v585 = vrsqrt.pop %v583
    %v586 = vrsqrt.pop %v584
    %v589 = vrot.slane %v586, 1
    %v592 = vmul.f32 %v566, %v585
    %v593 = vmul.f32 %v567, %v589
    %v594 = vlaneseq
    %v595 = vshrl.u32 %v594, 7
    %v596 = vsub.s32 5, %v595
    %v597 = vrot.slane %v28, %v596
    %v598 = vmul.f32 %v592, %v597
    %v599 = vmul.f32 %v593, %v597
    %v600 = vlaneseq
    %v601 = vshrl.u32 %v600, 7
    %v602 = vsub.s32 6, %v601
    %v603 = vrot.slane %v28, %v602
    %v604 = vadd.f32 %v598, %v603
    %v605 = vadd.f32 %v599, %v603
    %v606 = vpack.c.bf16 %v604, %v604
    %v607 = vpack.c.bf16 %v605, %v605
    %v608 = vld [vmem:[%s4] sm:$0xf]
    %v609 = vld [vmem:[%s4 + $0x4] sm:$0xf]
    %v610 = vld [vmem:[%s4 + $0x8] sm:$0xf]
    %v611 = vld [vmem:[%s4 + $0xc] sm:$0xf]
    %v612 = vlaneseq
    %v613 = vshrl.u32 %v612, 7
    %v614 = vsub.s32 7, %v613
    %v615 = vrot.slane %v28, %v614
    %v618 = vunpack.c.l.b16 %v606
    %v619 = vunpack.c.l.b16 %v607
    %v620 = vrot.slane %v618, 7
    %v621 = vrot.slane %v619, 6
    %v622 = vsel %vm160, %v621, %v620
    %v623 = vpack.c.b16 %v622, %v622
    %v628 = vunpack.c.l.b16 %v608
    %v629 = vunpack.c.l.b16 %v609
    %v630 = vunpack.c.l.b16 %v610
    %v631 = vunpack.c.l.b16 %v611
    %v632 = vpack.c.b16 %v629, %v628
    %v633 = vpack.c.b16 %v631, %v630
    %v637 = vsel %vm50, %v623, 0
    %639 = vmatprep.subr.bf16.mxu0 0
    %640 = vmatpush1.bf16.msra.mxu0 %v632
    %641 = vmatprep.subr.bf16.mxu0 0
    %642 = vmatpush1.bf16.msra.mxu0 %v633
    %643 = vmatprep.subr.bf16.mxu0 0
    %644 = vmatpush1.bf16.msra.mxu0 0
    %645 = vmatprep.subr.bf16.mxu0 0
    %646 = vmatpush1.bf16.msra.mxu0 0
    %647 = vmatprep.subr.bf16.mxu0 0
    %648 = vmatpush1.bf16.msra.mxu0 0
    %649 = vmatprep.subr.bf16.mxu0 0
    %650 = vmatpush1.bf16.msra.mxu0 0
    %651 = vmatprep.subr.bf16.mxu0 0
    %652 = vmatpush1.bf16.msra.mxu0 0
    %653 = vmatprep.subr.bf16.mxu0 0
    %654 = vmatpush1.bf16.msra.mxu0 0
    %655 = vmatprep.subr.bf16.mxu0 0
    %656 = vmatpush1.bf16.msra.mxu0 0
    %657 = vmatprep.subr.bf16.mxu0 0
    %658 = vmatpush1.bf16.msra.mxu0 0
    %659 = vmatprep.subr.bf16.mxu0 0
    %660 = vmatpush1.bf16.msra.mxu0 0
    %661 = vmatprep.subr.bf16.mxu0 0
    %662 = vmatpush1.bf16.msra.mxu0 0
    %663 = vmatprep.subr.bf16.mxu0 0
    %664 = vmatpush1.bf16.msra.mxu0 0
    %665 = vmatprep.subr.bf16.mxu0 0
    %666 = vmatpush1.bf16.msra.mxu0 0
    %667 = vmatprep.subr.bf16.mxu0 0
    %668 = vmatpush1.bf16.msra.mxu0 0
    %669 = vmatprep.subr.bf16.mxu0 0
    %670 = vmatpush1.bf16.msra.mxu0 0
    %671 = vmatprep.mubr.bf16.mxu0 0
    %672 = vmatmul.mubr.bf16.gmra.mrb[0].mxu0 %v637
    %v673 = vpop.f32.mrb[0].mxu0
    %v674 = vadd.f32 %v615, %v673
    %v675 = vpop.f32.mrb[0].mxu0
    %v676 = vpop.f32.mrb[0].mxu0
    %v677 = vpop.f32.mrb[0].mxu0
    %678 = vdwg.mxu0
    %679 = vst [vmem:[#allocation2] sm:$0x3] %v674
    // Predicated region
    $region26: #{email_classifier_forward.1} parent=1 // pred_check
      _
    $region27: #{email_classifier_forward.1} parent=1 // pred_check_branch
      %681 = sbr.rel (0) target = $region29
    $region28: #{email_classifier_forward.1} parent=1 // pred_region
      %s683 = ssub.s32 32, 32
      %684 = vsyncadd [#allocation3], %s683
      %s686 = sshll.u32 [#allocation2], 4
      %s687 = int_to_ptr.vmem [resolvable:$true] %s686
      %689 = dma.vmem_to_hbm [thread:$0]  %s687, 32, %s6, [#allocation3]
    $region29: #{email_classifier_forward.1} parent=1 // pred_fallthru
      _
    // Predicated region
    $region30: #{email_classifier_forward.1} parent=1 // pred_check
      _
    $region31: #{email_classifier_forward.1} parent=1 // pred_check_branch
      %691 = sbr.rel (0) target = $region33
    $region32: #{email_classifier_forward.1} parent=1 // pred_region
      %692 = dma.done [#allocation3], 32
    $region33: #{email_classifier_forward.1} parent=1 // pred_fallthru
      _
    %693 = vsyncpa [#allocation3], 1

</llo_original>
